<compile_context>
chip_gen: v5e
topology: v5e:2x2
jax: 0.10.0
libtpu: 0.0.40
codegen_flags: <defaults>
</compile_context>

<pallas_src>
import jax
import jax.numpy as jnp
from jax.experimental import pallas as pl
from jax.experimental.pallas import tpu as pltpu


# ---------------------------------------------------------------------------
# Kernels
# ---------------------------------------------------------------------------

def _fused_kernel(r_ref, d_ref, i_ref, o_ref):
    """Single-pass kernel: block = (Tr, H*W), full lane extent per block."""
    x = i_ref[...]
    # AdaptiveAvgPool2d(1) / AdaptiveMaxPool2d(1) == per-row mean / max.
    a = jnp.mean(x, axis=-1, keepdims=True, dtype=jnp.float32)   # (Tr, 1) f32
    b = jnp.max(x, axis=-1, keepdims=True).astype(jnp.float32)   # (Tr, 1) f32
    r = r_ref[...].astype(jnp.float32)
    d = d_ref[...].astype(jnp.float32)
    s = jax.nn.sigmoid(a * r + b * d)                            # (Tr, HW)
    o_ref[...] = ((r + d) * s).astype(o_ref.dtype)               # == r*s + d*s


def _make_reduce_kernel(lanes, tl):
    """Pass 1 of the two-pass path: per-row sum (-> mean) and max over lanes."""
    needs_mask = (lanes % tl) != 0

    def kernel(i_ref, a_ref, b_ref):
        k = pl.program_id(1)

        @pl.when(k == 0)
        def _():
            a_ref[...] = jnp.zeros_like(a_ref)
            b_ref[...] = jnp.full_like(b_ref, -jnp.inf)

        x = i_ref[...]
        if needs_mask:
            lane_ids = k * tl + jax.lax.broadcasted_iota(
                jnp.int32, x.shape, x.ndim - 1)
            valid = lane_ids < lanes
            xs = jnp.where(valid, x, jnp.zeros((), x.dtype))
            xm = jnp.where(valid, x, jnp.full((), -jnp.inf, x.dtype))
        else:
            xs = x
            xm = x

        a_ref[...] += jnp.sum(xs, axis=-1, keepdims=True, dtype=jnp.float32)
        b_ref[...] = jnp.maximum(
            b_ref[...], jnp.max(xm, axis=-1, keepdims=True).astype(jnp.float32))

        @pl.when(k == pl.num_programs(1) - 1)
        def _():
            a_ref[...] = a_ref[...] * jnp.float32(1.0 / lanes)

    return kernel


def _scale_kernel(r_ref, d_ref, a_ref, b_ref, o_ref):
    """Pass 2 of the two-pass path: s = sigmoid(a*r + b*d), out = (r+d)*s."""
    r = r_ref[...].astype(jnp.float32)
    d = d_ref[...].astype(jnp.float32)
    s = jax.nn.sigmoid(a_ref[...] * r + b_ref[...] * d)
    o_ref[...] = ((r + d) * s).astype(o_ref.dtype)


# ---------------------------------------------------------------------------
# Tiling / sizing helpers
# ---------------------------------------------------------------------------

def _sublane_align(dtype):
    """Native sublane multiple for the dtype: 8 (f32), 16 (bf16), 32 (int8)."""
    return max(8, 32 // jnp.dtype(dtype).itemsize)


def _vmem_capacity_bytes():
    try:
        info = pltpu.get_tpu_info()
        cap = getattr(info, "vmem_capacity_bytes", None)
        if cap:
            return int(cap)
    except Exception:
        pass
    return 64 << 20  # conservative: v7x physical VMEM per TensorCore


def _pick_row_tile(rows, lanes, itemsize, max_block_bytes, align):
    """Largest row tile (multiple of `align`) whose block fits the budget,
    preferring divisors of `rows` and at least 2 grid steps (megacore)."""
    bytes_per_row = max(1, lanes * itemsize)
    tr = (max_block_bytes // bytes_per_row) // align * align
    tr = max(align, tr)
    tr = min(tr, rows)
    if tr < align or rows <= align:
        return rows  # tiny problem: single full-extent block (always legal)
    # Prefer a tile that divides rows exactly (no padded boundary block).
    if rows % tr != 0:
        cand = tr
        while cand >= align and rows % cand != 0:
            cand -= align
        if cand >= align:
            tr = cand
    # v7x megacore: ensure >= 2 grid steps when rows allow it, so both
    # TensorCores get work under dimension_semantics=("parallel",).
    if tr == rows and rows >= 2 * align:
        cand = (rows // 2) // align * align
        while cand >= align and rows % cand != 0:
            cand -= align
        if cand >= align:
            tr = cand
        else:
            tr = -(-(rows // 2) // align) * align  # round half up to align
    return tr


def _pick_two_pass_tiles(rows, lanes, itemsize, align, max_block_bytes):
    """(row tile, lane tile) for the lane-tiled fallback path."""
    if rows <= align:
        tr = rows
    else:
        tr = max(align, min((rows // align) * align, 8 * align))
    tl = (max_block_bytes // max(1, tr * itemsize)) // 128 * 128
    tl = max(128, tl)
    if tl >= lanes:
        tl = lanes
    return tr, tl


# ---------------------------------------------------------------------------
# Dispatch paths
# ---------------------------------------------------------------------------

def _newdp_single_pass(r2, d2, i2, rows, lanes, itemsize, align,
                       max_block_bytes, vmem_limit_bytes):
    tr = _pick_row_tile(rows, lanes, itemsize, max_block_bytes, align)
    grid = (pl.cdiv(rows, tr),)
    spec = pl.BlockSpec((tr, lanes), lambda m: (m, 0))
    cost = pl.CostEstimate(
        flops=7 * rows * lanes,
        transcendentals=rows * lanes,
        bytes_accessed=4 * rows * lanes * itemsize)
    return pl.pallas_call(
        _fused_kernel,
        out_shape=jax.ShapeDtypeStruct((rows, lanes), r2.dtype),
        grid_spec=pltpu.PrefetchScalarGridSpec(
            num_scalar_prefetch=0,
            grid=grid,
            in_specs=[spec, spec, spec],
            out_specs=spec),
        compiler_params=pltpu.CompilerParams(
            dimension_semantics=("parallel",),
            vmem_limit_bytes=vmem_limit_bytes),
        cost_estimate=cost,
    )(r2, d2, i2)


def _newdp_two_pass(r2, d2, i2, rows, lanes, itemsize, align,
                    max_block_bytes, vmem_limit_bytes):
    tr, tl = _pick_two_pass_tiles(rows, lanes, itemsize, align, max_block_bytes)
    grid = (pl.cdiv(rows, tr), pl.cdiv(lanes, tl))

    in_spec = pl.BlockSpec((tr, tl), lambda m, k: (m, k))
    red_out_spec = pl.BlockSpec((tr, 1), lambda m, k: (m, 0))

    # Pass 1: per-row mean / max of i (read i once).
    a2, b2 = pl.pallas_call(
        _make_reduce_kernel(lanes, tl),
        out_shape=(jax.ShapeDtypeStruct((rows, 1), jnp.float32),
                   jax.ShapeDtypeStruct((rows, 1), jnp.float32)),
        grid_spec=pltpu.PrefetchScalarGridSpec(
            num_scalar_prefetch=0,
            grid=grid,
            in_specs=[in_spec],
            out_specs=[red_out_spec, red_out_spec]),
        compiler_params=pltpu.CompilerParams(
            dimension_semantics=("parallel", "arbitrary"),
            vmem_limit_bytes=vmem_limit_bytes),
        cost_estimate=pl.CostEstimate(
            flops=2 * rows * lanes,
            transcendentals=0,
            bytes_accessed=rows * lanes * itemsize + 2 * rows * 4),
    )(i2)

    # Pass 2: s = sigmoid(a*r + b*d), out = (r + d) * s  (read r, d; write out).
    out2 = pl.pallas_call(
        _scale_kernel,
        out_shape=jax.ShapeDtypeStruct((rows, lanes), r2.dtype),
        grid_spec=pltpu.PrefetchScalarGridSpec(
            num_scalar_prefetch=0,
            grid=grid,
            in_specs=[in_spec, in_spec, red_out_spec, red_out_spec],
            out_specs=in_spec),
        compiler_params=pltpu.CompilerParams(
            dimension_semantics=("parallel", "parallel"),
            vmem_limit_bytes=vmem_limit_bytes),
        cost_estimate=pl.CostEstimate(
            flops=6 * rows * lanes,
            transcendentals=rows * lanes,
            bytes_accessed=3 * rows * lanes * itemsize + 2 * rows * 4),
    )(r2, d2, a2, b2)
    return out2


# ---------------------------------------------------------------------------
# Public wrapper
# ---------------------------------------------------------------------------

def newdp_forward(r, d, i, *, max_block_bytes=None, vmem_limit_bytes=None,
                  allow_reference_fallback=True):
    """Pallas TPU forward pass of `newdp`. r, d, i: (N, C, H, W), same shape."""
    assert r.shape == d.shape == i.shape
    N, C, H, W = r.shape
    rows, lanes = N * C, H * W
    itemsize = jnp.dtype(r.dtype).itemsize
    align = _sublane_align(r.dtype)

    # Tiny spatial maps: launch overhead + partial-lane DMA dominate; let XLA
    # fuse the trivially small elementwise/reduction chain instead.
    if allow_reference_fallback and lanes < 128:
        return newdp_reference(r, d, i)

    # Generation-aware VMEM budget (v7x: 64 MiB physical; v5e/v6e: 128 MiB).
    cap = _vmem_capacity_bytes()
    if vmem_limit_bytes is None:
        vmem_limit_bytes = max(32 << 20, min(cap // 2, 64 << 20))
    if max_block_bytes is None:
        # Double-buffered working set ~= 8 blocks + f32 temporaries.
        max_block_bytes = min(6 << 20, max(2 << 20, vmem_limit_bytes // 10))

    # Lane-dense 2D layout: (rows, lanes) with the big spatial extent on lanes.
    r2 = r.reshape(rows, lanes)
    d2 = d.reshape(rows, lanes)
    i2 = i.reshape(rows, lanes)

    single_pass = min(align, rows) * lanes * itemsize <= max_block_bytes
    if single_pass:
        out2 = _newdp_single_pass(r2, d2, i2, rows, lanes, itemsize, align,
                                  max_block_bytes, vmem_limit_bytes)
    else:
        out2 = _newdp_two_pass(r2, d2, i2, rows, lanes, itemsize, align,
                               max_block_bytes, vmem_limit_bytes)
    return out2.reshape(N, C, H, W)


def newdp_reference(r, d, i):
    """Pure-JAX reference matching the PyTorch forward."""
    a = jnp.mean(i, axis=(2, 3), keepdims=True)
    b = jnp.max(i, axis=(2, 3), keepdims=True)
    s = jax.nn.sigmoid(a * r + b * d)
    return r * s + d * s


def init_params(key, in_planes, out_planes, kernel_size, groups=1):
    """Deterministic init of the (unused-in-forward) conv weight, for fidelity
    with the PyTorch module's __init__ (bias=False)."""
    # TODO(synk): self.conv is never called in forward(); weight kept for shape fidelity only.
    w_key = jax.random.fold_in(key, 0)
    conv_w = jax.random.normal(
        w_key, (out_planes, in_planes // groups, kernel_size, kernel_size),
        dtype=jnp.float32) * 0.02
    return {"conv_weight": conv_w}


if __name__ == "__main__":
    key = jax.random.PRNGKey(0)

    # Small shapes consistent with the module's forward: r, d, i all NCHW.
    N, C, H, W = 2, 4, 16, 16
    kr, kd, ki = jax.random.split(key, 3)
    r = jax.random.normal(kr, (N, C, H, W), dtype=jnp.float32)
    d = jax.random.normal(kd, (N, C, H, W), dtype=jnp.float32)
    i = jax.random.normal(ki, (N, C, H, W), dtype=jnp.float32)

    # Parameters (conv weight is unused in forward, initialized for fidelity).
    params = init_params(key, in_planes=C, out_planes=C, kernel_size=3)

    ref = newdp_reference(r, d, i)

    # Main (single-pass fused) path.
    out = jax.block_until_ready(newdp_forward(r, d, i))
    assert out.shape == (N, C, H, W)
    assert jnp.allclose(out, ref, atol=1e-5, rtol=1e-5), "mismatch (fused path)"

    # Also exercise the lane-tiled two-pass fallback (forced via a tiny block
    # budget) so the large-H*W path is validated on hardware as well.
    out2 = jax.block_until_ready(newdp_forward(r, d, i, max_block_bytes=4096))
    assert jnp.allclose(out2, ref, atol=1e-5, rtol=1e-5), "mismatch (two-pass path)"

    print("KERNEL_OK")
</pallas_src>

<mosaic_0001>
module attributes {stable_mosaic.version = 11 : i64} {
  func.func @_fused_kernel(%arg0: i32, %arg1: memref<8x256xf32, #tpu.memory_space<vmem>>, %arg2: memref<8x256xf32, #tpu.memory_space<vmem>>, %arg3: memref<8x256xf32, #tpu.memory_space<vmem>>, %arg4: memref<8x256xf32, #tpu.memory_space<vmem>>) attributes {dimension_semantics = [#tpu.dimension_semantics<parallel>], iteration_bounds = array<i64: 1>, scalar_prefetch = 0 : i64, scratch_operands = 0 : i64, tpu.core_type = #tpu.core_type<tc>, window_params = [{transform_indices = @transform_0, window_bounds = array<i64: 8, 256>}, {transform_indices = @transform_1, window_bounds = array<i64: 8, 256>}, {transform_indices = @transform_2, window_bounds = array<i64: 8, 256>}, {transform_indices = @transform_3, window_bounds = array<i64: 8, 256>}]} {
    %c0 = arith.constant 0 : index
    %c0_0 = arith.constant 0 : index
    %0 = vector.load %arg3[%c0, %c0_0] : memref<8x256xf32, #tpu.memory_space<vmem>>, vector<8x256xf32>
    %cst = arith.constant dense<0.000000e+00> : vector<8xf32>
    %1 = vector.multi_reduction <add>, %0, %cst [1] : vector<8x256xf32> to vector<8xf32>
    %2 = vector.shape_cast %1 : vector<8xf32> to vector<8x1xf32>
    %cst_1 = arith.constant 2.560000e+02 : f32
    %3 = vector.broadcast %cst_1 : f32 to vector<8x1xf32>
    %4 = arith.divf %2, %3 : vector<8x1xf32>
    %cst_2 = arith.constant dense<0xFF800000> : vector<8xf32>
    %5 = vector.multi_reduction <maximumf>, %0, %cst_2 [1] : vector<8x256xf32> to vector<8xf32>
    %6 = vector.shape_cast %5 : vector<8xf32> to vector<8x1xf32>
    %c0_3 = arith.constant 0 : index
    %c0_4 = arith.constant 0 : index
    %7 = vector.load %arg1[%c0_3, %c0_4] : memref<8x256xf32, #tpu.memory_space<vmem>>, vector<8x256xf32>
    %c0_5 = arith.constant 0 : index
    %c0_6 = arith.constant 0 : index
    %8 = vector.load %arg2[%c0_5, %c0_6] : memref<8x256xf32, #tpu.memory_space<vmem>>, vector<8x256xf32>
    %9 = vector.broadcast %4 : vector<8x1xf32> to vector<8x256xf32>
    %10 = arith.mulf %9, %7 : vector<8x256xf32>
    %11 = vector.broadcast %6 : vector<8x1xf32> to vector<8x256xf32>
    %12 = arith.mulf %11, %8 : vector<8x256xf32>
    %13 = arith.addf %10, %12 : vector<8x256xf32>
    %14 = arith.negf %13 : vector<8x256xf32>
    %15 = math.exp %14 : vector<8x256xf32>
    %cst_7 = arith.constant 1.000000e+00 : f32
    %16 = vector.broadcast %cst_7 : f32 to vector<8x256xf32>
    %17 = arith.addf %16, %15 : vector<8x256xf32>
    %18 = arith.divf %16, %17 : vector<8x256xf32>
    %19 = arith.addf %7, %8 : vector<8x256xf32>
    %20 = arith.mulf %19, %18 : vector<8x256xf32>
    %c0_8 = arith.constant 0 : index
    %c0_9 = arith.constant 0 : index
    %21 = vector.load %arg4[%c0_8, %c0_9] : memref<8x256xf32, #tpu.memory_space<vmem>>, vector<8x256xf32>
    tpu.vector_store %arg4[%c0_8, %c0_9], %20 {strides = array<i32>} : memref<8x256xf32, #tpu.memory_space<vmem>>, vector<8x256xf32>,
    return
  }
  func.func @transform_0(%arg0: i32) -> (i32, i32) {
    %c0_i32 = arith.constant 0 : i32
    %c0_i32_0 = arith.constant 0 : i32
    return %arg0, %c0_i32 : i32, i32
  }
  func.func @transform_1(%arg0: i32) -> (i32, i32) {
    %c0_i32 = arith.constant 0 : i32
    %c0_i32_0 = arith.constant 0 : i32
    return %arg0, %c0_i32 : i32, i32
  }
  func.func @transform_2(%arg0: i32) -> (i32, i32) {
    %c0_i32 = arith.constant 0 : i32
    %c0_i32_0 = arith.constant 0 : i32
    return %arg0, %c0_i32 : i32, i32
  }
  func.func @transform_3(%arg0: i32) -> (i32, i32) {
    %c0_i32 = arith.constant 0 : i32
    %c0_i32_0 = arith.constant 0 : i32
    return %arg0, %c0_i32 : i32, i32
  }
}

</mosaic_0001>

<llo_original>
// kernel: tpu_custom_call.1
$region0: #{tpu_custom_call.1}
  #allocation0 [shape = 'u32[]', space=smem, size = 0x4, offset = 0x4, fixed_abs, tag = 'smem constant byte address 0x4 - core index']
  #allocation1 [shape = 'u32[72,128]{1,0:T(1,128)}', space=vmem, size = 0x9000, scoped, tag = 'internal scratch']
  %s0 = inlined_call_operand.hbm [shape: f32[8,256], index: 0, kind: input, shape index: {}]
  %s1 = inlined_call_operand.hbm [shape: f32[8,256], index: 1, kind: input, shape index: {}]
  %s2 = inlined_call_operand.hbm [shape: f32[8,256], index: 2, kind: input, shape index: {}]
  %s3 = inlined_call_operand.hbm [shape: f32[8,256], index: 3, kind: output, shape index: {}]
  %s4 = sld [smem:[#allocation0]]
  $region34: #{tpu_custom_call.1} parent=0
    _
  %s6 = ssub.s32 1, %s4
  %s7 = scalar_select 0, %s6, %s4
  $region1: #{tpu_custom_call.1} parent=0
    #allocation2 [shape = 'u8[8192]{0}', space=vmem, size = 0x2000, scoped, tag = 'input window, operand 0, single buffered']
    #allocation3 [shape = 's32[1]{0}', space=sflag, size = 0x4, scoped, tag = 'scoped memory for tpu_custom_call.1']
    #allocation4 [shape = 's32[1]{0}', space=sflag, size = 0x4, scoped, tag = 'scoped memory for tpu_custom_call.1']
    #allocation5 [shape = 'u8[8192]{0}', space=vmem, size = 0x2000, scoped, tag = 'input window, operand 1, single buffered']
    #allocation6 [shape = 's32[1]{0}', space=sflag, size = 0x4, scoped, tag = 'scoped memory for tpu_custom_call.1']
    #allocation7 [shape = 'u8[8192]{0}', space=vmem, size = 0x2000, scoped, tag = 'input window, operand 2, single buffered']
    #allocation8 [shape = 'u8[8192]{0}', space=vmem, size = 0x2000, scoped, tag = 'output window, operand 0, single buffered']
    %8 = vsyncpa [#allocation3], 0
    %9 = vsyncpa [#allocation6], 0
    %10 = vsyncpa [#allocation4], 0
    // Predicated region
    $region2: #{tpu_custom_call.1} parent=1 // pred_check
      _
    $region3: #{tpu_custom_call.1} parent=1 // pred_check_branch
      %12 = sbr.rel (0) target = $region5
    $region4: #{tpu_custom_call.1} parent=1 // pred_region
      %14 = vsyncadd [#allocation3], 0
      %s16 = sshll.u32 %s0, 4
      %s17 = int_to_ptr.hbm [resolvable:$true] %s16
      %s18 = sshll.u32 [#allocation2], 4
      %s19 = int_to_ptr.vmem [resolvable:$true] %s18
      %21 = dma.hbm_to_vmem [thread:$0]  %s17, 256, %s19, [#allocation3]
    $region5: #{tpu_custom_call.1} parent=1 // pred_fallthru
      _
    // Predicated region
    $region6: #{tpu_custom_call.1} parent=1 // pred_check
      _
    $region7: #{tpu_custom_call.1} parent=1 // pred_check_branch
      %23 = sbr.rel (0) target = $region9
    $region8: #{tpu_custom_call.1} parent=1 // pred_region
      %25 = vsyncadd [#allocation6], 0
      %s27 = sshll.u32 %s1, 4
      %s28 = int_to_ptr.hbm [resolvable:$true] %s27
      %s29 = sshll.u32 [#allocation5], 4
      %s30 = int_to_ptr.vmem [resolvable:$true] %s29
      %32 = dma.hbm_to_vmem [thread:$0]  %s28, 256, %s30, [#allocation6]
    $region9: #{tpu_custom_call.1} parent=1 // pred_fallthru
      _
    // Predicated region
    $region10: #{tpu_custom_call.1} parent=1 // pred_check
      _
    $region11: #{tpu_custom_call.1} parent=1 // pred_check_branch
      %34 = sbr.rel (0) target = $region13
    $region12: #{tpu_custom_call.1} parent=1 // pred_region
      %36 = vsyncadd [#allocation6], 0
      %s38 = sshll.u32 %s2, 4
      %s39 = int_to_ptr.hbm [resolvable:$true] %s38
      %s40 = sshll.u32 [#allocation7], 4
      %s41 = int_to_ptr.vmem [resolvable:$true] %s40
      %43 = dma.hbm_to_vmem [thread:$0]  %s39, 256, %s41, [#allocation6]
    $region13: #{tpu_custom_call.1} parent=1 // pred_fallthru
      _
    // Predicated region
    $region14: #{tpu_custom_call.1} parent=1 // pred_check
      _
    $region15: #{tpu_custom_call.1} parent=1 // pred_check_branch
      %45 = sbr.rel (0) target = $region17
    $region16: #{tpu_custom_call.1} parent=1 // pred_region
      %47 = dma.done [#allocation3], 256
    $region17: #{tpu_custom_call.1} parent=1 // pred_fallthru
      _
    // Predicated region
    $region18: #{tpu_custom_call.1} parent=1 // pred_check
      _
    $region19: #{tpu_custom_call.1} parent=1 // pred_check_branch
      %49 = sbr.rel (0) target = $region21
    $region20: #{tpu_custom_call.1} parent=1 // pred_region
      %51 = dma.done [#allocation6], 256
    $region21: #{tpu_custom_call.1} parent=1 // pred_fallthru
      _
    // Predicated region
    $region22: #{tpu_custom_call.1} parent=1 // pred_check
      _
    $region23: #{tpu_custom_call.1} parent=1 // pred_check_branch
      %53 = sbr.rel (0) target = $region25
    $region24: #{tpu_custom_call.1} parent=1 // pred_region
      %55 = dma.done [#allocation6], 256
    $region25: #{tpu_custom_call.1} parent=1 // pred_fallthru
      _
    %v56 = vld [vmem:[#allocation7] sm:$0xff]
    %v57 = vld [vmem:[#allocation7 + $0x8] sm:$0xff]
    %v58 = vadd.f32 %v56, %v57
    %59 = vadd.xlane.f32.xlu0 %v58
    %v60 = vpop.xlane.xlu0 %59
    %v61 = vrcp.pop 256.0
    %v62 = vmul.f32 256.0, %v61
    %v63 = vsub.f32 1.0, %v62
    %v64 = vmul.f32 %v61, %v63
    %v65 = vadd.f32 %v61, %v64
    %vm66 = vweird.f32 %v61
    %v67 = vsel %vm66, %v61, %v65
    %v68 = vmul.f32 %v60, %v67
    %v69 = vmax.f32 %v56, %v57
    %70 = vmax.xlane.f32.xlu0 %v69
    %v71 = vpop.xlane.xlu0 %70
    %v72 = vld [vmem:[#allocation2] sm:$0xff]
    %v73 = vld [vmem:[#allocation2 + $0x8] sm:$0xff]
    %v74 = vld [vmem:[#allocation5] sm:$0xff]
    %v75 = vld [vmem:[#allocation5 + $0x8] sm:$0xff]
    %v76 = vmul.f32 %v68, %v72
    %v77 = vmul.f32 %v68, %v73
    %v78 = vmul.f32 %v71, %v74
    %v79 = vmul.f32 %v71, %v75
    %v80 = vadd.f32 %v76, %v78
    %v81 = vadd.f32 %v77, %v79
    %v82 = vxor.u32 %v80, 2147483648
    %v83 = vxor.u32 %v81, 2147483648
    %v84 = vmul.f32 %v82, 1.442695
    %v85 = vpow.pop %v84
    %v86 = vmul.f32 %v83, 1.442695
    %v87 = vpow.pop %v86
    %v88 = vadd.f32 %v85, 1.0
    %v89 = vadd.f32 %v87, 1.0
    %v90 = vrcp.pop %v88
    %v91 = vmul.f32 %v88, %v90
    %v92 = vsub.f32 1.0, %v91
    %v93 = vmul.f32 %v90, %v92
    %v94 = vadd.f32 %v90, %v93
    %vm95 = vweird.f32 %v88
    %vm96 = vweird.f32 %v90
    %vm97 = vmor %vm95, %vm96
    %v98 = vsel %vm97, %v90, %v94
    %v99 = vand.u32 2147483647, %v88
    %vm100 = vcmp.eq.f32.partialorder %v99, 8.507059e+37
    %v101 = vand.u32 %v88, 2147483648
    %v102 = vor.u32 1.1754944e-38, %v101
    %v103 = vsel %vm100, %v102, %v98
    %v104 = vmul.f32 1.0, %v103
    %v105 = vrcp.pop %v89
    %v106 = vmul.f32 %v89, %v105
    %v107 = vsub.f32 1.0, %v106
    %v108 = vmul.f32 %v105, %v107
    %v109 = vadd.f32 %v105, %v108
    %vm110 = vweird.f32 %v89
    %vm111 = vweird.f32 %v105
    %vm112 = vmor %vm110, %vm111
    %v113 = vsel %vm112, %v105, %v109
    %v114 = vand.u32 2147483647, %v89
    %vm115 = vcmp.eq.f32.partialorder %v114, 8.507059e+37
    %v116 = vand.u32 %v89, 2147483648
    %v117 = vor.u32 1.1754944e-38, %v116
    %v118 = vsel %vm115, %v117, %v113
    %v119 = vmul.f32 1.0, %v118
    %v120 = vadd.f32 %v72, %v74
    %v121 = vadd.f32 %v73, %v75
    %v122 = vmul.f32 %v120, %v104
    %v123 = vmul.f32 %v121, %v119
    %124 = vst [vmem:[#allocation8] sm:$0xff] %v122
    %125 = vst [vmem:[#allocation8 + $0x8] sm:$0xff] %v123
    // Predicated region
    $region26: #{tpu_custom_call.1} parent=1 // pred_check
      _
    $region27: #{tpu_custom_call.1} parent=1 // pred_check_branch
      %127 = sbr.rel (0) target = $region29
    $region28: #{tpu_custom_call.1} parent=1 // pred_region
      %129 = vsyncadd [#allocation4], 0
      %s131 = sshll.u32 [#allocation8], 4
      %s132 = int_to_ptr.vmem [resolvable:$true] %s131
      %s133 = sshll.u32 %s3, 4
      %s134 = int_to_ptr.hbm [resolvable:$true] %s133
      %136 = dma.vmem_to_hbm [thread:$0]  %s132, 256, %s134, [#allocation4]
    $region29: #{tpu_custom_call.1} parent=1 // pred_fallthru
      _
    // Predicated region
    $region30: #{tpu_custom_call.1} parent=1 // pred_check
      _
    $region31: #{tpu_custom_call.1} parent=1 // pred_check_branch
      %138 = sbr.rel (0) target = $region33
    $region32: #{tpu_custom_call.1} parent=1 // pred_region
      %140 = dma.done [#allocation4], 256
    $region33: #{tpu_custom_call.1} parent=1 // pred_fallthru
      _
    %141 = vsyncpa [#allocation3], 1
    %142 = vsyncpa [#allocation6], 1
    %143 = vsyncpa [#allocation4], 1

</llo_original>
